<compile_context>
chip_gen: v6e
topology: v6e:2x2x1
jax: 0.10.0
libtpu: 0.0.40
codegen_flags: <defaults>
</compile_context>

<pallas_src>
import functools

import jax
import jax.numpy as jnp
from jax import lax
from jax.experimental import pallas as pl
from jax.experimental.pallas import tpu as pltpu

NEG_SLOPE = 0.01   # PyTorch nn.LeakyReLU default negative_slope
LANES = 128        # vreg lane width
SUB_ROWS = 8       # rows per inner-loop slab -> (8, 128) == one f32 vreg


def _leaky_relu(x):
    # max(x, a*x) == LeakyReLU(x) for 0 < a < 1 (mul+max: 2 VPU ops, not 3).
    return jnp.maximum(x, NEG_SLOPE * x)


def mlp_kernel(x_ref, w1_ref, b1_ref, w2_ref, b2_ref, w3_ref, b3_ref, o_ref):
    """x_ref: (3, RT, 128) VMEM; params in SMEM; o_ref: (RT, 128) VMEM."""
    r_tile = o_ref.shape[0]
    n_sub = r_tile // SUB_ROWS

    # Hoist the 73 scalar parameter loads out of the batch loop (otherwise the
    # 2-slot scalar unit contends with the 4-slot VALU as the binding unit).
    w1 = [[w1_ref[i, j] for j in range(8)] for i in range(3)]
    b1 = [b1_ref[j] for j in range(8)]
    w2 = [[w2_ref[i, j] for j in range(4)] for i in range(8)]
    b2 = [b2_ref[j] for j in range(4)]
    w3 = [w3_ref[i, 0] for i in range(4)]
    b3 = b3_ref[0]

    def body(s, carry):
        r0 = pl.multiple_of(s * SUB_ROWS, SUB_ROWS)
        xs = [x_ref[i, pl.ds(r0, SUB_ROWS), :] for i in range(3)]  # 3 x (8,128)

        # Linear(3, 8) + LeakyReLU -- scalar-weight broadcast FMAs on the VPU.
        h1 = []
        for j in range(8):
            acc = xs[0] * w1[0][j]
            acc = acc + xs[1] * w1[1][j]
            acc = acc + xs[2] * w1[2][j]
            h1.append(_leaky_relu(acc + b1[j]))

        # Linear(8, 4) + LeakyReLU
        h2 = []
        for j in range(4):
            acc = h1[0] * w2[0][j]
            for i in range(1, 8):
                acc = acc + h1[i] * w2[i][j]
            h2.append(_leaky_relu(acc + b2[j]))

        # Linear(4, 1)
        out = h2[0] * w3[0]
        for i in range(1, 4):
            out = out + h2[i] * w3[i]
        out = out + b3

        o_ref[pl.ds(r0, SUB_ROWS), :] = out.astype(o_ref.dtype)  # dense vst
        return carry

    lax.fori_loop(0, n_sub, body, 0)


def _round_up(n, m):
    return ((n + m - 1) // m) * m


@functools.partial(jax.jit, static_argnames=("r_tile_max",))
def simple_neuron_forward(x, params, *, r_tile_max=256):
    """x: (B, 3) float32 -> (B, 1) float32."""
    w1, b1, w2, b2, w3, b3 = params
    B = x.shape[0]

    # Batch as a 2D slab (rows, 128): rows multiple of 8, lanes = 128.
    rows = _round_up(pl.cdiv(B, LANES), SUB_ROWS)
    if rows <= SUB_ROWS:
        r_tile = rows
    else:
        # Keep >= 2 grid steps when there is work to split (v7x has 2 TCs),
        # but cap the tile (~32k elems/step) so step overhead stays amortized
        # while x+out tiles (384 KiB + 128 KiB, double-buffered) stay tiny vs
        # VMEM on every generation (incl. v7x's 64 MiB).
        r_tile = min(r_tile_max, _round_up(pl.cdiv(rows, 2), SUB_ROWS), rows)
    rows_total = _round_up(rows, r_tile)
    grid = (rows_total // r_tile,)
    Bp = rows_total * LANES

    # Single relayout: pad ragged tail, feature-major transpose, slab reshape.
    xt = (jnp.pad(x.astype(jnp.float32), ((0, Bp - B), (0, 0)))  # (Bp, 3)
          .T.reshape(3, rows_total, LANES))                      # (3, rows, 128)

    smem = pl.BlockSpec(memory_space=pltpu.MemorySpace.SMEM)     # resident params

    flops = 2 * Bp * (3 * 8 + 8 * 4 + 4 * 1)
    bytes_accessed = 4 * (3 * Bp + Bp) + 4 * (3 * 8 + 8 + 8 * 4 + 4 + 4 + 1)

    out2d = pl.pallas_call(
        mlp_kernel,
        out_shape=jax.ShapeDtypeStruct((rows_total, LANES), jnp.float32),
        grid=grid,
        in_specs=[
            pl.BlockSpec((3, r_tile, LANES), lambda i: (0, i, 0)),  # stream x tiles
            smem, smem, smem, smem, smem, smem,                     # w1 b1 w2 b2 w3 b3
        ],
        out_specs=pl.BlockSpec((r_tile, LANES), lambda i: (i, 0)),
        compiler_params=pltpu.CompilerParams(
            dimension_semantics=("parallel",),      # v7x: shard grid across 2 TCs
            vmem_limit_bytes=32 * 1024 * 1024,
        ),
        cost_estimate=pl.CostEstimate(
            flops=flops, transcendentals=0, bytes_accessed=bytes_accessed),
    )(xt, w1, b1, w2, b2, w3, b3)

    # (rows, 128) -> (Bp,) is a free row-major flatten; slice off padding.
    return out2d.reshape(-1)[:B].reshape(B, 1)


def init_params(key):
    """Deterministic synthetic init matching nn.Linear shapes.

    Weights stored as (in_features, out_features); biases as 1-D (out_features,)
    so the kernel can read them as SMEM scalars.
    """
    ks = jax.random.split(key, 6)

    def lin(kw, kb, fan_in, fan_out):
        bound = 1.0 / jnp.sqrt(jnp.float32(fan_in))
        w = jax.random.uniform(kw, (fan_in, fan_out), jnp.float32, -bound, bound)
        b = jax.random.uniform(kb, (fan_out,), jnp.float32, -bound, bound)
        return w, b

    w1, b1 = lin(ks[0], ks[1], 3, 8)
    w2, b2 = lin(ks[2], ks[3], 8, 4)
    w3, b3 = lin(ks[4], ks[5], 4, 1)
    return (w1, b1, w2, b2, w3, b3)


def _leaky_relu_ref(x):
    return jnp.where(x > 0, x, NEG_SLOPE * x)


def reference_forward(x, params):
    w1, b1, w2, b2, w3, b3 = params
    h1 = _leaky_relu_ref(x @ w1 + b1)
    h2 = _leaky_relu_ref(h1 @ w2 + b2)
    return h2 @ w3 + b3


if __name__ == "__main__":
    key = jax.random.PRNGKey(0)
    k_param, k_x1, k_x2 = jax.random.split(key, 3)

    params = init_params(k_param)

    # Small case: batch=8, in_features=3 (single grid step).
    x_small = jax.random.normal(k_x1, (8, 3), jnp.float32)
    out_small = jax.block_until_ready(simple_neuron_forward(x_small, params))
    ref_small = reference_forward(x_small, params)
    assert out_small.shape == (8, 1), out_small.shape
    assert jnp.allclose(out_small, ref_small, atol=1e-5, rtol=1e-5)

    # Ragged case exercising the slab layout, padding and a multi-step grid.
    x_big = jax.random.normal(k_x2, (3000, 3), jnp.float32)
    out_big = jax.block_until_ready(simple_neuron_forward(x_big, params))
    ref_big = reference_forward(x_big, params)
    assert out_big.shape == (3000, 1), out_big.shape
    assert jnp.allclose(out_big, ref_big, atol=1e-5, rtol=1e-5)

    print("KERNEL_OK")
</pallas_src>

<mosaic_0001>
module attributes {stable_mosaic.version = 11 : i64} {
  func.func @mlp_kernel(%arg0: i32, %arg1: memref<3x8x128xf32, #tpu.memory_space<vmem>>, %arg2: memref<3x8xf32, #tpu.memory_space<smem>>, %arg3: memref<8xf32, #tpu.memory_space<smem>>, %arg4: memref<8x4xf32, #tpu.memory_space<smem>>, %arg5: memref<4xf32, #tpu.memory_space<smem>>, %arg6: memref<4x1xf32, #tpu.memory_space<smem>>, %arg7: memref<1xf32, #tpu.memory_space<smem>>, %arg8: memref<8x128xf32, #tpu.memory_space<vmem>>) attributes {dimension_semantics = [#tpu.dimension_semantics<parallel>], iteration_bounds = array<i64: 1>, scalar_prefetch = 0 : i64, scratch_operands = 0 : i64, tpu.core_type = #tpu.core_type<tc>, window_params = [{transform_indices = @transform_0, window_bounds = array<i64: 3, 8, 128>}, {transform_indices = @transform_1, window_bounds = array<i64: 3, 8>}, {transform_indices = @transform_2, window_bounds = array<i64: 8>}, {transform_indices = @transform_3, window_bounds = array<i64: 8, 4>}, {transform_indices = @transform_4, window_bounds = array<i64: 4>}, {transform_indices = @transform_5, window_bounds = array<i64: 4, 1>}, {transform_indices = @transform_6, window_bounds = array<i64: 1>}, {transform_indices = @transform_7, window_bounds = array<i64: 8, 128>}]} {
    %c0 = arith.constant 0 : index
    %c0_0 = arith.constant 0 : index
    %0 = memref.load %arg2[%c0, %c0_0] : memref<3x8xf32, #tpu.memory_space<smem>>
    %c0_1 = arith.constant 0 : index
    %c1 = arith.constant 1 : index
    %1 = memref.load %arg2[%c0_1, %c1] : memref<3x8xf32, #tpu.memory_space<smem>>
    %c0_2 = arith.constant 0 : index
    %c2 = arith.constant 2 : index
    %2 = memref.load %arg2[%c0_2, %c2] : memref<3x8xf32, #tpu.memory_space<smem>>
    %c0_3 = arith.constant 0 : index
    %c3 = arith.constant 3 : index
    %3 = memref.load %arg2[%c0_3, %c3] : memref<3x8xf32, #tpu.memory_space<smem>>
    %c0_4 = arith.constant 0 : index
    %c4 = arith.constant 4 : index
    %4 = memref.load %arg2[%c0_4, %c4] : memref<3x8xf32, #tpu.memory_space<smem>>
    %c0_5 = arith.constant 0 : index
    %c5 = arith.constant 5 : index
    %5 = memref.load %arg2[%c0_5, %c5] : memref<3x8xf32, #tpu.memory_space<smem>>
    %c0_6 = arith.constant 0 : index
    %c6 = arith.constant 6 : index
    %6 = memref.load %arg2[%c0_6, %c6] : memref<3x8xf32, #tpu.memory_space<smem>>
    %c0_7 = arith.constant 0 : index
    %c7 = arith.constant 7 : index
    %7 = memref.load %arg2[%c0_7, %c7] : memref<3x8xf32, #tpu.memory_space<smem>>
    %c1_8 = arith.constant 1 : index
    %c0_9 = arith.constant 0 : index
    %8 = memref.load %arg2[%c1_8, %c0_9] : memref<3x8xf32, #tpu.memory_space<smem>>
    %c1_10 = arith.constant 1 : index
    %c1_11 = arith.constant 1 : index
    %9 = memref.load %arg2[%c1_10, %c1_11] : memref<3x8xf32, #tpu.memory_space<smem>>
    %c1_12 = arith.constant 1 : index
    %c2_13 = arith.constant 2 : index
    %10 = memref.load %arg2[%c1_12, %c2_13] : memref<3x8xf32, #tpu.memory_space<smem>>
    %c1_14 = arith.constant 1 : index
    %c3_15 = arith.constant 3 : index
    %11 = memref.load %arg2[%c1_14, %c3_15] : memref<3x8xf32, #tpu.memory_space<smem>>
    %c1_16 = arith.constant 1 : index
    %c4_17 = arith.constant 4 : index
    %12 = memref.load %arg2[%c1_16, %c4_17] : memref<3x8xf32, #tpu.memory_space<smem>>
    %c1_18 = arith.constant 1 : index
    %c5_19 = arith.constant 5 : index
    %13 = memref.load %arg2[%c1_18, %c5_19] : memref<3x8xf32, #tpu.memory_space<smem>>
    %c1_20 = arith.constant 1 : index
    %c6_21 = arith.constant 6 : index
    %14 = memref.load %arg2[%c1_20, %c6_21] : memref<3x8xf32, #tpu.memory_space<smem>>
    %c1_22 = arith.constant 1 : index
    %c7_23 = arith.constant 7 : index
    %15 = memref.load %arg2[%c1_22, %c7_23] : memref<3x8xf32, #tpu.memory_space<smem>>
    %c2_24 = arith.constant 2 : index
    %c0_25 = arith.constant 0 : index
    %16 = memref.load %arg2[%c2_24, %c0_25] : memref<3x8xf32, #tpu.memory_space<smem>>
    %c2_26 = arith.constant 2 : index
    %c1_27 = arith.constant 1 : index
    %17 = memref.load %arg2[%c2_26, %c1_27] : memref<3x8xf32, #tpu.memory_space<smem>>
    %c2_28 = arith.constant 2 : index
    %c2_29 = arith.constant 2 : index
    %18 = memref.load %arg2[%c2_28, %c2_29] : memref<3x8xf32, #tpu.memory_space<smem>>
    %c2_30 = arith.constant 2 : index
    %c3_31 = arith.constant 3 : index
    %19 = memref.load %arg2[%c2_30, %c3_31] : memref<3x8xf32, #tpu.memory_space<smem>>
    %c2_32 = arith.constant 2 : index
    %c4_33 = arith.constant 4 : index
    %20 = memref.load %arg2[%c2_32, %c4_33] : memref<3x8xf32, #tpu.memory_space<smem>>
    %c2_34 = arith.constant 2 : index
    %c5_35 = arith.constant 5 : index
    %21 = memref.load %arg2[%c2_34, %c5_35] : memref<3x8xf32, #tpu.memory_space<smem>>
    %c2_36 = arith.constant 2 : index
    %c6_37 = arith.constant 6 : index
    %22 = memref.load %arg2[%c2_36, %c6_37] : memref<3x8xf32, #tpu.memory_space<smem>>
    %c2_38 = arith.constant 2 : index
    %c7_39 = arith.constant 7 : index
    %23 = memref.load %arg2[%c2_38, %c7_39] : memref<3x8xf32, #tpu.memory_space<smem>>
    %c0_40 = arith.constant 0 : index
    %24 = memref.load %arg3[%c0_40] : memref<8xf32, #tpu.memory_space<smem>>
    %c1_41 = arith.constant 1 : index
    %25 = memref.load %arg3[%c1_41] : memref<8xf32, #tpu.memory_space<smem>>
    %c2_42 = arith.constant 2 : index
    %26 = memref.load %arg3[%c2_42] : memref<8xf32, #tpu.memory_space<smem>>
    %c3_43 = arith.constant 3 : index
    %27 = memref.load %arg3[%c3_43] : memref<8xf32, #tpu.memory_space<smem>>
    %c4_44 = arith.constant 4 : index
    %28 = memref.load %arg3[%c4_44] : memref<8xf32, #tpu.memory_space<smem>>
    %c5_45 = arith.constant 5 : index
    %29 = memref.load %arg3[%c5_45] : memref<8xf32, #tpu.memory_space<smem>>
    %c6_46 = arith.constant 6 : index
    %30 = memref.load %arg3[%c6_46] : memref<8xf32, #tpu.memory_space<smem>>
    %c7_47 = arith.constant 7 : index
    %31 = memref.load %arg3[%c7_47] : memref<8xf32, #tpu.memory_space<smem>>
    %c0_48 = arith.constant 0 : index
    %c0_49 = arith.constant 0 : index
    %32 = memref.load %arg4[%c0_48, %c0_49] : memref<8x4xf32, #tpu.memory_space<smem>>
    %c0_50 = arith.constant 0 : index
    %c1_51 = arith.constant 1 : index
    %33 = memref.load %arg4[%c0_50, %c1_51] : memref<8x4xf32, #tpu.memory_space<smem>>
    %c0_52 = arith.constant 0 : index
    %c2_53 = arith.constant 2 : index
    %34 = memref.load %arg4[%c0_52, %c2_53] : memref<8x4xf32, #tpu.memory_space<smem>>
    %c0_54 = arith.constant 0 : index
    %c3_55 = arith.constant 3 : index
    %35 = memref.load %arg4[%c0_54, %c3_55] : memref<8x4xf32, #tpu.memory_space<smem>>
    %c1_56 = arith.constant 1 : index
    %c0_57 = arith.constant 0 : index
    %36 = memref.load %arg4[%c1_56, %c0_57] : memref<8x4xf32, #tpu.memory_space<smem>>
    %c1_58 = arith.constant 1 : index
    %c1_59 = arith.constant 1 : index
    %37 = memref.load %arg4[%c1_58, %c1_59] : memref<8x4xf32, #tpu.memory_space<smem>>
    %c1_60 = arith.constant 1 : index
    %c2_61 = arith.constant 2 : index
    %38 = memref.load %arg4[%c1_60, %c2_61] : memref<8x4xf32, #tpu.memory_space<smem>>
    %c1_62 = arith.constant 1 : index
    %c3_63 = arith.constant 3 : index
    %39 = memref.load %arg4[%c1_62, %c3_63] : memref<8x4xf32, #tpu.memory_space<smem>>
    %c2_64 = arith.constant 2 : index
    %c0_65 = arith.constant 0 : index
    %40 = memref.load %arg4[%c2_64, %c0_65] : memref<8x4xf32, #tpu.memory_space<smem>>
    %c2_66 = arith.constant 2 : index
    %c1_67 = arith.constant 1 : index
    %41 = memref.load %arg4[%c2_66, %c1_67] : memref<8x4xf32, #tpu.memory_space<smem>>
    %c2_68 = arith.constant 2 : index
    %c2_69 = arith.constant 2 : index
    %42 = memref.load %arg4[%c2_68, %c2_69] : memref<8x4xf32, #tpu.memory_space<smem>>
    %c2_70 = arith.constant 2 : index
    %c3_71 = arith.constant 3 : index
    %43 = memref.load %arg4[%c2_70, %c3_71] : memref<8x4xf32, #tpu.memory_space<smem>>
    %c3_72 = arith.constant 3 : index
    %c0_73 = arith.constant 0 : index
    %44 = memref.load %arg4[%c3_72, %c0_73] : memref<8x4xf32, #tpu.memory_space<smem>>
    %c3_74 = arith.constant 3 : index
    %c1_75 = arith.constant 1 : index
    %45 = memref.load %arg4[%c3_74, %c1_75] : memref<8x4xf32, #tpu.memory_space<smem>>
    %c3_76 = arith.constant 3 : index
    %c2_77 = arith.constant 2 : index
    %46 = memref.load %arg4[%c3_76, %c2_77] : memref<8x4xf32, #tpu.memory_space<smem>>
    %c3_78 = arith.constant 3 : index
    %c3_79 = arith.constant 3 : index
    %47 = memref.load %arg4[%c3_78, %c3_79] : memref<8x4xf32, #tpu.memory_space<smem>>
    %c4_80 = arith.constant 4 : index
    %c0_81 = arith.constant 0 : index
    %48 = memref.load %arg4[%c4_80, %c0_81] : memref<8x4xf32, #tpu.memory_space<smem>>
    %c4_82 = arith.constant 4 : index
    %c1_83 = arith.constant 1 : index
    %49 = memref.load %arg4[%c4_82, %c1_83] : memref<8x4xf32, #tpu.memory_space<smem>>
    %c4_84 = arith.constant 4 : index
    %c2_85 = arith.constant 2 : index
    %50 = memref.load %arg4[%c4_84, %c2_85] : memref<8x4xf32, #tpu.memory_space<smem>>
    %c4_86 = arith.constant 4 : index
    %c3_87 = arith.constant 3 : index
    %51 = memref.load %arg4[%c4_86, %c3_87] : memref<8x4xf32, #tpu.memory_space<smem>>
    %c5_88 = arith.constant 5 : index
    %c0_89 = arith.constant 0 : index
    %52 = memref.load %arg4[%c5_88, %c0_89] : memref<8x4xf32, #tpu.memory_space<smem>>
    %c5_90 = arith.constant 5 : index
    %c1_91 = arith.constant 1 : index
    %53 = memref.load %arg4[%c5_90, %c1_91] : memref<8x4xf32, #tpu.memory_space<smem>>
    %c5_92 = arith.constant 5 : index
    %c2_93 = arith.constant 2 : index
    %54 = memref.load %arg4[%c5_92, %c2_93] : memref<8x4xf32, #tpu.memory_space<smem>>
    %c5_94 = arith.constant 5 : index
    %c3_95 = arith.constant 3 : index
    %55 = memref.load %arg4[%c5_94, %c3_95] : memref<8x4xf32, #tpu.memory_space<smem>>
    %c6_96 = arith.constant 6 : index
    %c0_97 = arith.constant 0 : index
    %56 = memref.load %arg4[%c6_96, %c0_97] : memref<8x4xf32, #tpu.memory_space<smem>>
    %c6_98 = arith.constant 6 : index
    %c1_99 = arith.constant 1 : index
    %57 = memref.load %arg4[%c6_98, %c1_99] : memref<8x4xf32, #tpu.memory_space<smem>>
    %c6_100 = arith.constant 6 : index
    %c2_101 = arith.constant 2 : index
    %58 = memref.load %arg4[%c6_100, %c2_101] : memref<8x4xf32, #tpu.memory_space<smem>>
    %c6_102 = arith.constant 6 : index
    %c3_103 = arith.constant 3 : index
    %59 = memref.load %arg4[%c6_102, %c3_103] : memref<8x4xf32, #tpu.memory_space<smem>>
    %c7_104 = arith.constant 7 : index
    %c0_105 = arith.constant 0 : index
    %60 = memref.load %arg4[%c7_104, %c0_105] : memref<8x4xf32, #tpu.memory_space<smem>>
    %c7_106 = arith.constant 7 : index
    %c1_107 = arith.constant 1 : index
    %61 = memref.load %arg4[%c7_106, %c1_107] : memref<8x4xf32, #tpu.memory_space<smem>>
    %c7_108 = arith.constant 7 : index
    %c2_109 = arith.constant 2 : index
    %62 = memref.load %arg4[%c7_108, %c2_109] : memref<8x4xf32, #tpu.memory_space<smem>>
    %c7_110 = arith.constant 7 : index
    %c3_111 = arith.constant 3 : index
    %63 = memref.load %arg4[%c7_110, %c3_111] : memref<8x4xf32, #tpu.memory_space<smem>>
    %c0_112 = arith.constant 0 : index
    %64 = memref.load %arg5[%c0_112] : memref<4xf32, #tpu.memory_space<smem>>
    %c1_113 = arith.constant 1 : index
    %65 = memref.load %arg5[%c1_113] : memref<4xf32, #tpu.memory_space<smem>>
    %c2_114 = arith.constant 2 : index
    %66 = memref.load %arg5[%c2_114] : memref<4xf32, #tpu.memory_space<smem>>
    %c3_115 = arith.constant 3 : index
    %67 = memref.load %arg5[%c3_115] : memref<4xf32, #tpu.memory_space<smem>>
    %c0_116 = arith.constant 0 : index
    %c0_117 = arith.constant 0 : index
    %68 = memref.load %arg6[%c0_116, %c0_117] : memref<4x1xf32, #tpu.memory_space<smem>>
    %c1_118 = arith.constant 1 : index
    %c0_119 = arith.constant 0 : index
    %69 = memref.load %arg6[%c1_118, %c0_119] : memref<4x1xf32, #tpu.memory_space<smem>>
    %c2_120 = arith.constant 2 : index
    %c0_121 = arith.constant 0 : index
    %70 = memref.load %arg6[%c2_120, %c0_121] : memref<4x1xf32, #tpu.memory_space<smem>>
    %c3_122 = arith.constant 3 : index
    %c0_123 = arith.constant 0 : index
    %71 = memref.load %arg6[%c3_122, %c0_123] : memref<4x1xf32, #tpu.memory_space<smem>>
    %c0_124 = arith.constant 0 : index
    %72 = memref.load %arg7[%c0_124] : memref<1xf32, #tpu.memory_space<smem>>
    %c0_i32 = arith.constant 0 : i32
    %c8_i32 = arith.constant 8 : i32
    %73 = arith.muli %c0_i32, %c8_i32 : i32
    %74 = tpu.assume_multiple %73, 8 : i32
    %c0_125 = arith.constant 0 : index
    %75 = arith.index_cast %74 : i32 to index
    %c0_126 = arith.constant 0 : index
    %76 = vector.load %arg1[%c0_125, %75, %c0_126] : memref<3x8x128xf32, #tpu.memory_space<vmem>>, vector<1x8x128xf32>
    %77 = vector.shape_cast %76 : vector<1x8x128xf32> to vector<8x128xf32>
    %c1_127 = arith.constant 1 : index
    %78 = arith.index_cast %74 : i32 to index
    %c0_128 = arith.constant 0 : index
    %79 = vector.load %arg1[%c1_127, %78, %c0_128] : memref<3x8x128xf32, #tpu.memory_space<vmem>>, vector<1x8x128xf32>
    %80 = vector.shape_cast %79 : vector<1x8x128xf32> to vector<8x128xf32>
    %c2_129 = arith.constant 2 : index
    %81 = arith.index_cast %74 : i32 to index
    %c0_130 = arith.constant 0 : index
    %82 = vector.load %arg1[%c2_129, %81, %c0_130] : memref<3x8x128xf32, #tpu.memory_space<vmem>>, vector<1x8x128xf32>
    %83 = vector.shape_cast %82 : vector<1x8x128xf32> to vector<8x128xf32>
    %84 = vector.broadcast %0 : f32 to vector<8x128xf32>
    %85 = arith.mulf %77, %84 : vector<8x128xf32>
    %86 = vector.broadcast %8 : f32 to vector<8x128xf32>
    %87 = arith.mulf %80, %86 : vector<8x128xf32>
    %88 = arith.addf %85, %87 : vector<8x128xf32>
    %89 = vector.broadcast %16 : f32 to vector<8x128xf32>
    %90 = arith.mulf %83, %89 : vector<8x128xf32>
    %91 = arith.addf %88, %90 : vector<8x128xf32>
    %92 = vector.broadcast %24 : f32 to vector<8x128xf32>
    %93 = arith.addf %91, %92 : vector<8x128xf32>
    %cst = arith.constant 0.00999999977 : f32
    %94 = vector.broadcast %cst : f32 to vector<8x128xf32>
    %95 = arith.mulf %94, %93 : vector<8x128xf32>
    %96 = arith.maximumf %93, %95 : vector<8x128xf32>
    %97 = vector.broadcast %1 : f32 to vector<8x128xf32>
    %98 = arith.mulf %77, %97 : vector<8x128xf32>
    %99 = vector.broadcast %9 : f32 to vector<8x128xf32>
    %100 = arith.mulf %80, %99 : vector<8x128xf32>
    %101 = arith.addf %98, %100 : vector<8x128xf32>
    %102 = vector.broadcast %17 : f32 to vector<8x128xf32>
    %103 = arith.mulf %83, %102 : vector<8x128xf32>
    %104 = arith.addf %101, %103 : vector<8x128xf32>
    %105 = vector.broadcast %25 : f32 to vector<8x128xf32>
    %106 = arith.addf %104, %105 : vector<8x128xf32>
    %cst_131 = arith.constant 0.00999999977 : f32
    %107 = vector.broadcast %cst_131 : f32 to vector<8x128xf32>
    %108 = arith.mulf %107, %106 : vector<8x128xf32>
    %109 = arith.maximumf %106, %108 : vector<8x128xf32>
    %110 = vector.broadcast %2 : f32 to vector<8x128xf32>
    %111 = arith.mulf %77, %110 : vector<8x128xf32>
    %112 = vector.broadcast %10 : f32 to vector<8x128xf32>
    %113 = arith.mulf %80, %112 : vector<8x128xf32>
    %114 = arith.addf %111, %113 : vector<8x128xf32>
    %115 = vector.broadcast %18 : f32 to vector<8x128xf32>
    %116 = arith.mulf %83, %115 : vector<8x128xf32>
    %117 = arith.addf %114, %116 : vector<8x128xf32>
    %118 = vector.broadcast %26 : f32 to vector<8x128xf32>
    %119 = arith.addf %117, %118 : vector<8x128xf32>
    %cst_132 = arith.constant 0.00999999977 : f32
    %120 = vector.broadcast %cst_132 : f32 to vector<8x128xf32>
    %121 = arith.mulf %120, %119 : vector<8x128xf32>
    %122 = arith.maximumf %119, %121 : vector<8x128xf32>
    %123 = vector.broadcast %3 : f32 to vector<8x128xf32>
    %124 = arith.mulf %77, %123 : vector<8x128xf32>
    %125 = vector.broadcast %11 : f32 to vector<8x128xf32>
    %126 = arith.mulf %80, %125 : vector<8x128xf32>
    %127 = arith.addf %124, %126 : vector<8x128xf32>
    %128 = vector.broadcast %19 : f32 to vector<8x128xf32>
    %129 = arith.mulf %83, %128 : vector<8x128xf32>
    %130 = arith.addf %127, %129 : vector<8x128xf32>
    %131 = vector.broadcast %27 : f32 to vector<8x128xf32>
    %132 = arith.addf %130, %131 : vector<8x128xf32>
    %cst_133 = arith.constant 0.00999999977 : f32
    %133 = vector.broadcast %cst_133 : f32 to vector<8x128xf32>
    %134 = arith.mulf %133, %132 : vector<8x128xf32>
    %135 = arith.maximumf %132, %134 : vector<8x128xf32>
    %136 = vector.broadcast %4 : f32 to vector<8x128xf32>
    %137 = arith.mulf %77, %136 : vector<8x128xf32>
    %138 = vector.broadcast %12 : f32 to vector<8x128xf32>
    %139 = arith.mulf %80, %138 : vector<8x128xf32>
    %140 = arith.addf %137, %139 : vector<8x128xf32>
    %141 = vector.broadcast %20 : f32 to vector<8x128xf32>
    %142 = arith.mulf %83, %141 : vector<8x128xf32>
    %143 = arith.addf %140, %142 : vector<8x128xf32>
    %144 = vector.broadcast %28 : f32 to vector<8x128xf32>
    %145 = arith.addf %143, %144 : vector<8x128xf32>
    %cst_134 = arith.constant 0.00999999977 : f32
    %146 = vector.broadcast %cst_134 : f32 to vector<8x128xf32>
    %147 = arith.mulf %146, %145 : vector<8x128xf32>
    %148 = arith.maximumf %145, %147 : vector<8x128xf32>
    %149 = vector.broadcast %5 : f32 to vector<8x128xf32>
    %150 = arith.mulf %77, %149 : vector<8x128xf32>
    %151 = vector.broadcast %13 : f32 to vector<8x128xf32>
    %152 = arith.mulf %80, %151 : vector<8x128xf32>
    %153 = arith.addf %150, %152 : vector<8x128xf32>
    %154 = vector.broadcast %21 : f32 to vector<8x128xf32>
    %155 = arith.mulf %83, %154 : vector<8x128xf32>
    %156 = arith.addf %153, %155 : vector<8x128xf32>
    %157 = vector.broadcast %29 : f32 to vector<8x128xf32>
    %158 = arith.addf %156, %157 : vector<8x128xf32>
    %cst_135 = arith.constant 0.00999999977 : f32
    %159 = vector.broadcast %cst_135 : f32 to vector<8x128xf32>
    %160 = arith.mulf %159, %158 : vector<8x128xf32>
    %161 = arith.maximumf %158, %160 : vector<8x128xf32>
    %162 = vector.broadcast %6 : f32 to vector<8x128xf32>
    %163 = arith.mulf %77, %162 : vector<8x128xf32>
    %164 = vector.broadcast %14 : f32 to vector<8x128xf32>
    %165 = arith.mulf %80, %164 : vector<8x128xf32>
    %166 = arith.addf %163, %165 : vector<8x128xf32>
    %167 = vector.broadcast %22 : f32 to vector<8x128xf32>
    %168 = arith.mulf %83, %167 : vector<8x128xf32>
    %169 = arith.addf %166, %168 : vector<8x128xf32>
    %170 = vector.broadcast %30 : f32 to vector<8x128xf32>
    %171 = arith.addf %169, %170 : vector<8x128xf32>
    %cst_136 = arith.constant 0.00999999977 : f32
    %172 = vector.broadcast %cst_136 : f32 to vector<8x128xf32>
    %173 = arith.mulf %172, %171 : vector<8x128xf32>
    %174 = arith.maximumf %171, %173 : vector<8x128xf32>
    %175 = vector.broadcast %7 : f32 to vector<8x128xf32>
    %176 = arith.mulf %77, %175 : vector<8x128xf32>
    %177 = vector.broadcast %15 : f32 to vector<8x128xf32>
    %178 = arith.mulf %80, %177 : vector<8x128xf32>
    %179 = arith.addf %176, %178 : vector<8x128xf32>
    %180 = vector.broadcast %23 : f32 to vector<8x128xf32>
    %181 = arith.mulf %83, %180 : vector<8x128xf32>
    %182 = arith.addf %179, %181 : vector<8x128xf32>
    %183 = vector.broadcast %31 : f32 to vector<8x128xf32>
    %184 = arith.addf %182, %183 : vector<8x128xf32>
    %cst_137 = arith.constant 0.00999999977 : f32
    %185 = vector.broadcast %cst_137 : f32 to vector<8x128xf32>
    %186 = arith.mulf %185, %184 : vector<8x128xf32>
    %187 = arith.maximumf %184, %186 : vector<8x128xf32>
    %188 = vector.broadcast %32 : f32 to vector<8x128xf32>
    %189 = arith.mulf %96, %188 : vector<8x128xf32>
    %190 = vector.broadcast %36 : f32 to vector<8x128xf32>
    %191 = arith.mulf %109, %190 : vector<8x128xf32>
    %192 = arith.addf %189, %191 : vector<8x128xf32>
    %193 = vector.broadcast %40 : f32 to vector<8x128xf32>
    %194 = arith.mulf %122, %193 : vector<8x128xf32>
    %195 = arith.addf %192, %194 : vector<8x128xf32>
    %196 = vector.broadcast %44 : f32 to vector<8x128xf32>
    %197 = arith.mulf %135, %196 : vector<8x128xf32>
    %198 = arith.addf %195, %197 : vector<8x128xf32>
    %199 = vector.broadcast %48 : f32 to vector<8x128xf32>
    %200 = arith.mulf %148, %199 : vector<8x128xf32>
    %201 = arith.addf %198, %200 : vector<8x128xf32>
    %202 = vector.broadcast %52 : f32 to vector<8x128xf32>
    %203 = arith.mulf %161, %202 : vector<8x128xf32>
    %204 = arith.addf %201, %203 : vector<8x128xf32>
    %205 = vector.broadcast %56 : f32 to vector<8x128xf32>
    %206 = arith.mulf %174, %205 : vector<8x128xf32>
    %207 = arith.addf %204, %206 : vector<8x128xf32>
    %208 = vector.broadcast %60 : f32 to vector<8x128xf32>
    %209 = arith.mulf %187, %208 : vector<8x128xf32>
    %210 = arith.addf %207, %209 : vector<8x128xf32>
    %211 = vector.broadcast %64 : f32 to vector<8x128xf32>
    %212 = arith.addf %210, %211 : vector<8x128xf32>
    %cst_138 = arith.constant 0.00999999977 : f32
    %213 = vector.broadcast %cst_138 : f32 to vector<8x128xf32>
    %214 = arith.mulf %213, %212 : vector<8x128xf32>
    %215 = arith.maximumf %212, %214 : vector<8x128xf32>
    %216 = vector.broadcast %33 : f32 to vector<8x128xf32>
    %217 = arith.mulf %96, %216 : vector<8x128xf32>
    %218 = vector.broadcast %37 : f32 to vector<8x128xf32>
    %219 = arith.mulf %109, %218 : vector<8x128xf32>
    %220 = arith.addf %217, %219 : vector<8x128xf32>
    %221 = vector.broadcast %41 : f32 to vector<8x128xf32>
    %222 = arith.mulf %122, %221 : vector<8x128xf32>
    %223 = arith.addf %220, %222 : vector<8x128xf32>
    %224 = vector.broadcast %45 : f32 to vector<8x128xf32>
    %225 = arith.mulf %135, %224 : vector<8x128xf32>
    %226 = arith.addf %223, %225 : vector<8x128xf32>
    %227 = vector.broadcast %49 : f32 to vector<8x128xf32>
    %228 = arith.mulf %148, %227 : vector<8x128xf32>
    %229 = arith.addf %226, %228 : vector<8x128xf32>
    %230 = vector.broadcast %53 : f32 to vector<8x128xf32>
    %231 = arith.mulf %161, %230 : vector<8x128xf32>
    %232 = arith.addf %229, %231 : vector<8x128xf32>
    %233 = vector.broadcast %57 : f32 to vector<8x128xf32>
    %234 = arith.mulf %174, %233 : vector<8x128xf32>
    %235 = arith.addf %232, %234 : vector<8x128xf32>
    %236 = vector.broadcast %61 : f32 to vector<8x128xf32>
    %237 = arith.mulf %187, %236 : vector<8x128xf32>
    %238 = arith.addf %235, %237 : vector<8x128xf32>
    %239 = vector.broadcast %65 : f32 to vector<8x128xf32>
    %240 = arith.addf %238, %239 : vector<8x128xf32>
    %cst_139 = arith.constant 0.00999999977 : f32
    %241 = vector.broadcast %cst_139 : f32 to vector<8x128xf32>
    %242 = arith.mulf %241, %240 : vector<8x128xf32>
    %243 = arith.maximumf %240, %242 : vector<8x128xf32>
    %244 = vector.broadcast %34 : f32 to vector<8x128xf32>
    %245 = arith.mulf %96, %244 : vector<8x128xf32>
    %246 = vector.broadcast %38 : f32 to vector<8x128xf32>
    %247 = arith.mulf %109, %246 : vector<8x128xf32>
    %248 = arith.addf %245, %247 : vector<8x128xf32>
    %249 = vector.broadcast %42 : f32 to vector<8x128xf32>
    %250 = arith.mulf %122, %249 : vector<8x128xf32>
    %251 = arith.addf %248, %250 : vector<8x128xf32>
    %252 = vector.broadcast %46 : f32 to vector<8x128xf32>
    %253 = arith.mulf %135, %252 : vector<8x128xf32>
    %254 = arith.addf %251, %253 : vector<8x128xf32>
    %255 = vector.broadcast %50 : f32 to vector<8x128xf32>
    %256 = arith.mulf %148, %255 : vector<8x128xf32>
    %257 = arith.addf %254, %256 : vector<8x128xf32>
    %258 = vector.broadcast %54 : f32 to vector<8x128xf32>
    %259 = arith.mulf %161, %258 : vector<8x128xf32>
    %260 = arith.addf %257, %259 : vector<8x128xf32>
    %261 = vector.broadcast %58 : f32 to vector<8x128xf32>
    %262 = arith.mulf %174, %261 : vector<8x128xf32>
    %263 = arith.addf %260, %262 : vector<8x128xf32>
    %264 = vector.broadcast %62 : f32 to vector<8x128xf32>
    %265 = arith.mulf %187, %264 : vector<8x128xf32>
    %266 = arith.addf %263, %265 : vector<8x128xf32>
    %267 = vector.broadcast %66 : f32 to vector<8x128xf32>
    %268 = arith.addf %266, %267 : vector<8x128xf32>
    %cst_140 = arith.constant 0.00999999977 : f32
    %269 = vector.broadcast %cst_140 : f32 to vector<8x128xf32>
    %270 = arith.mulf %269, %268 : vector<8x128xf32>
    %271 = arith.maximumf %268, %270 : vector<8x128xf32>
    %272 = vector.broadcast %35 : f32 to vector<8x128xf32>
    %273 = arith.mulf %96, %272 : vector<8x128xf32>
    %274 = vector.broadcast %39 : f32 to vector<8x128xf32>
    %275 = arith.mulf %109, %274 : vector<8x128xf32>
    %276 = arith.addf %273, %275 : vector<8x128xf32>
    %277 = vector.broadcast %43 : f32 to vector<8x128xf32>
    %278 = arith.mulf %122, %277 : vector<8x128xf32>
    %279 = arith.addf %276, %278 : vector<8x128xf32>
    %280 = vector.broadcast %47 : f32 to vector<8x128xf32>
    %281 = arith.mulf %135, %280 : vector<8x128xf32>
    %282 = arith.addf %279, %281 : vector<8x128xf32>
    %283 = vector.broadcast %51 : f32 to vector<8x128xf32>
    %284 = arith.mulf %148, %283 : vector<8x128xf32>
    %285 = arith.addf %282, %284 : vector<8x128xf32>
    %286 = vector.broadcast %55 : f32 to vector<8x128xf32>
    %287 = arith.mulf %161, %286 : vector<8x128xf32>
    %288 = arith.addf %285, %287 : vector<8x128xf32>
    %289 = vector.broadcast %59 : f32 to vector<8x128xf32>
    %290 = arith.mulf %174, %289 : vector<8x128xf32>
    %291 = arith.addf %288, %290 : vector<8x128xf32>
    %292 = vector.broadcast %63 : f32 to vector<8x128xf32>
    %293 = arith.mulf %187, %292 : vector<8x128xf32>
    %294 = arith.addf %291, %293 : vector<8x128xf32>
    %295 = vector.broadcast %67 : f32 to vector<8x128xf32>
    %296 = arith.addf %294, %295 : vector<8x128xf32>
    %cst_141 = arith.constant 0.00999999977 : f32
    %297 = vector.broadcast %cst_141 : f32 to vector<8x128xf32>
    %298 = arith.mulf %297, %296 : vector<8x128xf32>
    %299 = arith.maximumf %296, %298 : vector<8x128xf32>
    %300 = vector.broadcast %68 : f32 to vector<8x128xf32>
    %301 = arith.mulf %215, %300 : vector<8x128xf32>
    %302 = vector.broadcast %69 : f32 to vector<8x128xf32>
    %303 = arith.mulf %243, %302 : vector<8x128xf32>
    %304 = arith.addf %301, %303 : vector<8x128xf32>
    %305 = vector.broadcast %70 : f32 to vector<8x128xf32>
    %306 = arith.mulf %271, %305 : vector<8x128xf32>
    %307 = arith.addf %304, %306 : vector<8x128xf32>
    %308 = vector.broadcast %71 : f32 to vector<8x128xf32>
    %309 = arith.mulf %299, %308 : vector<8x128xf32>
    %310 = arith.addf %307, %309 : vector<8x128xf32>
    %311 = vector.broadcast %72 : f32 to vector<8x128xf32>
    %312 = arith.addf %310, %311 : vector<8x128xf32>
    %313 = arith.index_cast %74 : i32 to index
    %c0_142 = arith.constant 0 : index
    %314 = vector.load %arg8[%313, %c0_142] : memref<8x128xf32, #tpu.memory_space<vmem>>, vector<8x128xf32>
    tpu.vector_store %arg8[%313, %c0_142], %312 {strides = array<i32>} : memref<8x128xf32, #tpu.memory_space<vmem>>, vector<8x128xf32>,
    %c1_i32 = arith.constant 1 : i32
    return
  }
  func.func @transform_0(%arg0: i32) -> (i32, i32, i32) {
    %c0_i32 = arith.constant 0 : i32
    %c0_i32_0 = arith.constant 0 : i32
    %c0_i32_1 = arith.constant 0 : i32
    return %c0_i32, %arg0, %c0_i32_0 : i32, i32, i32
  }
  func.func @transform_1(%arg0: i32) -> (i32, i32) {
    %c0_i32 = arith.constant 0 : i32
    %c0_i32_0 = arith.constant 0 : i32
    %c0_i32_1 = arith.constant 0 : i32
    return %c0_i32, %c0_i32_0 : i32, i32
  }
  func.func @transform_2(%arg0: i32) -> i32 {
    %c0_i32 = arith.constant 0 : i32
    %c0_i32_0 = arith.constant 0 : i32
    return %c0_i32 : i32
  }
  func.func @transform_3(%arg0: i32) -> (i32, i32) {
    %c0_i32 = arith.constant 0 : i32
    %c0_i32_0 = arith.constant 0 : i32
    %c0_i32_1 = arith.constant 0 : i32
    return %c0_i32, %c0_i32_0 : i32, i32
  }
  func.func @transform_4(%arg0: i32) -> i32 {
    %c0_i32 = arith.constant 0 : i32
    %c0_i32_0 = arith.constant 0 : i32
    return %c0_i32 : i32
  }
  func.func @transform_5(%arg0: i32) -> (i32, i32) {
    %c0_i32 = arith.constant 0 : i32
    %c0_i32_0 = arith.constant 0 : i32
    %c0_i32_1 = arith.constant 0 : i32
    return %c0_i32, %c0_i32_0 : i32, i32
  }
  func.func @transform_6(%arg0: i32) -> i32 {
    %c0_i32 = arith.constant 0 : i32
    %c0_i32_0 = arith.constant 0 : i32
    return %c0_i32 : i32
  }
  func.func @transform_7(%arg0: i32) -> (i32, i32) {
    %c0_i32 = arith.constant 0 : i32
    %c0_i32_0 = arith.constant 0 : i32
    return %arg0, %c0_i32 : i32, i32
  }
}

</mosaic_0001>

<llo_original>
// kernel: simple_neuron_forward.1
$region0: #{simple_neuron_forward.1}
  #allocation0 [shape = 'u32[]', space=smem, size = 0x4, offset = 0x4, fixed_abs, tag = 'smem constant byte address 0x4 - core index']
  #allocation1 [shape = 'u32[144,128]{1,0:T(1,128)}', space=vmem, size = 0x12000, scoped, tag = 'internal scratch']
  #allocation2 [shape = 'f32[1]{0:T(128)S(6)}', space=smem, size = 0x200, scoped, tag = 'scoped memory for simple_neuron_forward.1']
  %s0 = inlined_call_operand.vmem [shape: f32[3,8,128], index: 0, kind: input, shape index: {}]
  %s1 = inlined_call_operand.vmem [shape: f32[3,8], index: 1, kind: input, shape index: {}]
  %s2 = inlined_call_operand.vmem [shape: f32[8], index: 2, kind: input, shape index: {}]
  %s3 = inlined_call_operand.vmem [shape: f32[8,4], index: 3, kind: input, shape index: {}]
  %s4 = inlined_call_operand.vmem [shape: f32[4], index: 4, kind: input, shape index: {}]
  %s5 = inlined_call_operand.vmem [shape: f32[4,1], index: 5, kind: input, shape index: {}]
  %s6 = inlined_call_operand.<no memory space> [shape: f32[1], index: 6, kind: input, shape index: {}]
  %s7 = inlined_call_operand.vmem [shape: f32[8,128], index: 7, kind: output, shape index: {}]
  %s8 = sld [smem:[#allocation0]]
  $region58: #{simple_neuron_forward.1} parent=0
    _
  %s10 = ssub.s32 1, %s8
  %s11 = scalar_select 0, %s10, %s8
  %12 = sst [smem:[#allocation2]] %s6
  $region1: #{simple_neuron_forward.1} parent=0
    #allocation3 [shape = 'u8[2048]{0}', space=smem, size = 0x800, scoped, tag = 'input window, operand 1, single buffered']
    #allocation4 [shape = 's32[1]{0}', space=sflag, size = 0x4, scoped, tag = 'scoped memory for simple_neuron_forward.1']
    #allocation5 [shape = 'u8[512]{0}', space=smem, size = 0x200, scoped, tag = 'input window, operand 2, single buffered']
    #allocation6 [shape = 's32[1]{0}', space=sflag, size = 0x4, scoped, tag = 'scoped memory for simple_neuron_forward.1']
    #allocation7 [shape = 'u8[4096]{0}', space=smem, size = 0x1000, scoped, tag = 'input window, operand 3, single buffered']
    #allocation8 [shape = 'u8[512]{0}', space=smem, size = 0x200, scoped, tag = 'input window, operand 4, single buffered']
    #allocation9 [shape = 's32[1]{0}', space=sflag, size = 0x4, scoped, tag = 'scoped memory for simple_neuron_forward.1']
    #allocation10 [shape = 'u8[2048]{0}', space=smem, size = 0x800, scoped, tag = 'input window, operand 5, single buffered']
    %13 = vsyncpa [#allocation4], 0
    %14 = vsyncpa [#allocation6], 0
    %15 = vsyncpa [#allocation9], 0
    // Predicated region
    $region2: #{simple_neuron_forward.1} parent=1 // pred_check
      _
    $region3: #{simple_neuron_forward.1} parent=1 // pred_check_branch
      %17 = sbr.rel (0) target = $region5
    $region4: #{simple_neuron_forward.1} parent=1 // pred_region
      _
    $region5: #{simple_neuron_forward.1} parent=1 // pred_fallthru
      _
    // Predicated region
    $region6: #{simple_neuron_forward.1} parent=1 // pred_check
      _
    $region7: #{simple_neuron_forward.1} parent=1 // pred_check_branch
      %19 = sbr.rel (0) target = $region9
    $region8: #{simple_neuron_forward.1} parent=1 // pred_region
      %s21 = ssub.s32 64, 64
      %22 = vsyncadd [#allocation4], %s21
      %s24 = sshll.u32 %s1, 4
      %s25 = int_to_ptr.vmem [resolvable:$true] %s24
      %27 = dma.vmem_to_smem %s25, 64, [#allocation3], [#allocation4]
    $region9: #{simple_neuron_forward.1} parent=1 // pred_fallthru
      _
    // Predicated region
    $region10: #{simple_neuron_forward.1} parent=1 // pred_check
      _
    $region11: #{simple_neuron_forward.1} parent=1 // pred_check_branch
      %29 = sbr.rel (0) target = $region13
    $region12: #{simple_neuron_forward.1} parent=1 // pred_region
      %s31 = ssub.s32 16, 16
      %32 = vsyncadd [#allocation6], %s31
      %s34 = sshll.u32 %s2, 4
      %s35 = int_to_ptr.vmem [resolvable:$true] %s34
      %37 = dma.vmem_to_smem %s35, 16, [#allocation5], [#allocation6]
    $region13: #{simple_neuron_forward.1} parent=1 // pred_fallthru
      _
    // Predicated region
    $region14: #{simple_neuron_forward.1} parent=1 // pred_check
      _
    $region15: #{simple_neuron_forward.1} parent=1 // pred_check_branch
      %39 = sbr.rel (0) target = $region17
    $region16: #{simple_neuron_forward.1} parent=1 // pred_region
      %s41 = ssub.s32 128, 128
      %42 = vsyncadd [#allocation6], %s41
      %s44 = sshll.u32 %s3, 4
      %s45 = int_to_ptr.vmem [resolvable:$true] %s44
      %47 = dma.vmem_to_smem %s45, 128, [#allocation7], [#allocation6]
    $region17: #{simple_neuron_forward.1} parent=1 // pred_fallthru
      _
    // Predicated region
    $region18: #{simple_neuron_forward.1} parent=1 // pred_check
      _
    $region19: #{simple_neuron_forward.1} parent=1 // pred_check_branch
      %49 = sbr.rel (0) target = $region21
    $region20: #{simple_neuron_forward.1} parent=1 // pred_region
      %s51 = ssub.s32 16, 16
      %52 = vsyncadd [#allocation9], %s51
      %s54 = sshll.u32 %s4, 4
      %s55 = int_to_ptr.vmem [resolvable:$true] %s54
      %57 = dma.vmem_to_smem %s55, 16, [#allocation8], [#allocation9]
    $region21: #{simple_neuron_forward.1} parent=1 // pred_fallthru
      _
    // Predicated region
    $region22: #{simple_neuron_forward.1} parent=1 // pred_check
      _
    $region23: #{simple_neuron_forward.1} parent=1 // pred_check_branch
      %59 = sbr.rel (0) target = $region25
    $region24: #{simple_neuron_forward.1} parent=1 // pred_region
      %s61 = ssub.s32 64, 64
      %62 = vsyncadd [#allocation9], %s61
      %s64 = sshll.u32 %s5, 4
      %s65 = int_to_ptr.vmem [resolvable:$true] %s64
      %67 = dma.vmem_to_smem %s65, 64, [#allocation10], [#allocation9]
    $region25: #{simple_neuron_forward.1} parent=1 // pred_fallthru
      _
    // Predicated region
    $region26: #{simple_neuron_forward.1} parent=1 // pred_check
      _
    $region27: #{simple_neuron_forward.1} parent=1 // pred_check_branch
      %69 = sbr.rel (0) target = $region29
    $region28: #{simple_neuron_forward.1} parent=1 // pred_region
      _
    $region29: #{simple_neuron_forward.1} parent=1 // pred_fallthru
      _
    // Predicated region
    $region30: #{simple_neuron_forward.1} parent=1 // pred_check
      _
    $region31: #{simple_neuron_forward.1} parent=1 // pred_check_branch
      %71 = sbr.rel (0) target = $region33
    $region32: #{simple_neuron_forward.1} parent=1 // pred_region
      %72 = dma.done [#allocation4], 64
    $region33: #{simple_neuron_forward.1} parent=1 // pred_fallthru
      _
    // Predicated region
    $region34: #{simple_neuron_forward.1} parent=1 // pred_check
      _
    $region35: #{simple_neuron_forward.1} parent=1 // pred_check_branch
      %74 = sbr.rel (0) target = $region37
    $region36: #{simple_neuron_forward.1} parent=1 // pred_region
      %75 = dma.done [#allocation6], 16
    $region37: #{simple_neuron_forward.1} parent=1 // pred_fallthru
      _
    // Predicated region
    $region38: #{simple_neuron_forward.1} parent=1 // pred_check
      _
    $region39: #{simple_neuron_forward.1} parent=1 // pred_check_branch
      %77 = sbr.rel (0) target = $region41
    $region40: #{simple_neuron_forward.1} parent=1 // pred_region
      %78 = dma.done [#allocation6], 128
    $region41: #{simple_neuron_forward.1} parent=1 // pred_fallthru
      _
    // Predicated region
    $region42: #{simple_neuron_forward.1} parent=1 // pred_check
      _
    $region43: #{simple_neuron_forward.1} parent=1 // pred_check_branch
      %80 = sbr.rel (0) target = $region45
    $region44: #{simple_neuron_forward.1} parent=1 // pred_region
      %81 = dma.done [#allocation9], 16
    $region45: #{simple_neuron_forward.1} parent=1 // pred_fallthru
      _
    // Predicated region
    $region46: #{simple_neuron_forward.1} parent=1 // pred_check
      _
    $region47: #{simple_neuron_forward.1} parent=1 // pred_check_branch
      %83 = sbr.rel (0) target = $region49
    $region48: #{simple_neuron_forward.1} parent=1 // pred_region
      %84 = dma.done [#allocation9], 64
    $region49: #{simple_neuron_forward.1} parent=1 // pred_fallthru
      _
    %85 = sfence
    %s86 = sld [smem:[#allocation3]]
    %s87 = sld [smem:[#allocation3 + $0x1]]
    %s88 = sld [smem:[#allocation3 + $0x2]]
    %s89 = sld [smem:[#allocation3 + $0x3]]
    %s90 = sld [smem:[#allocation3 + $0x4]]
    %s91 = sld [smem:[#allocation3 + $0x5]]
    %s92 = sld [smem:[#allocation3 + $0x6]]
    %s93 = sld [smem:[#allocation3 + $0x7]]
    %s94 = sld [smem:[#allocation3 + $0x80]]
    %s95 = sld [smem:[#allocation3 + $0x81]]
    %s96 = sld [smem:[#allocation3 + $0x82]]
    %s97 = sld [smem:[#allocation3 + $0x83]]
    %s98 = sld [smem:[#allocation3 + $0x84]]
    %s99 = sld [smem:[#allocation3 + $0x85]]
    %s100 = sld [smem:[#allocation3 + $0x86]]
    %s101 = sld [smem:[#allocation3 + $0x87]]
    %s102 = sld [smem:[#allocation3 + $0x100]]
    %s103 = sld [smem:[#allocation3 + $0x101]]
    %s104 = sld [smem:[#allocation3 + $0x102]]
    %s105 = sld [smem:[#allocation3 + $0x103]]
    %s106 = sld [smem:[#allocation3 + $0x104]]
    %s107 = sld [smem:[#allocation3 + $0x105]]
    %s108 = sld [smem:[#allocation3 + $0x106]]
    %s109 = sld [smem:[#allocation3 + $0x107]]
    %s110 = sld [smem:[#allocation5]]
    %s111 = sld [smem:[#allocation5 + $0x1]]
    %s112 = sld [smem:[#allocation5 + $0x2]]
    %s113 = sld [smem:[#allocation5 + $0x3]]
    %s114 = sld [smem:[#allocation5 + $0x4]]
    %s115 = sld [smem:[#allocation5 + $0x5]]
    %s116 = sld [smem:[#allocation5 + $0x6]]
    %s117 = sld [smem:[#allocation5 + $0x7]]
    %s118 = sld [smem:[#allocation7]]
    %s119 = sld [smem:[#allocation7 + $0x1]]
    %s120 = sld [smem:[#allocation7 + $0x2]]
    %s121 = sld [smem:[#allocation7 + $0x3]]
    %s122 = sld [smem:[#allocation7 + $0x80]]
    %s123 = sld [smem:[#allocation7 + $0x81]]
    %s124 = sld [smem:[#allocation7 + $0x82]]
    %s125 = sld [smem:[#allocation7 + $0x83]]
    %s126 = sld [smem:[#allocation7 + $0x100]]
    %s127 = sld [smem:[#allocation7 + $0x101]]
    %s128 = sld [smem:[#allocation7 + $0x102]]
    %s129 = sld [smem:[#allocation7 + $0x103]]
    %s130 = sld [smem:[#allocation7 + $0x180]]
    %s131 = sld [smem:[#allocation7 + $0x181]]
    %s132 = sld [smem:[#allocation7 + $0x182]]
    %s133 = sld [smem:[#allocation7 + $0x183]]
    %s134 = sld [smem:[#allocation7 + $0x200]]
    %s135 = sld [smem:[#allocation7 + $0x201]]
    %s136 = sld [smem:[#allocation7 + $0x202]]
    %s137 = sld [smem:[#allocation7 + $0x203]]
    %s138 = sld [smem:[#allocation7 + $0x280]]
    %s139 = sld [smem:[#allocation7 + $0x281]]
    %s140 = sld [smem:[#allocation7 + $0x282]]
    %s141 = sld [smem:[#allocation7 + $0x283]]
    %s142 = sld [smem:[#allocation7 + $0x300]]
    %s143 = sld [smem:[#allocation7 + $0x301]]
    %s144 = sld [smem:[#allocation7 + $0x302]]
    %s145 = sld [smem:[#allocation7 + $0x303]]
    %s146 = sld [smem:[#allocation7 + $0x380]]
    %s147 = sld [smem:[#allocation7 + $0x381]]
    %s148 = sld [smem:[#allocation7 + $0x382]]
    %s149 = sld [smem:[#allocation7 + $0x383]]
    %s150 = sld [smem:[#allocation8]]
    %s151 = sld [smem:[#allocation8 + $0x1]]
    %s152 = sld [smem:[#allocation8 + $0x2]]
    %s153 = sld [smem:[#allocation8 + $0x3]]
    %s154 = sld [smem:[#allocation10]]
    %s155 = sld [smem:[#allocation10 + $0x80]]
    %s156 = sld [smem:[#allocation10 + $0x100]]
    %s157 = sld [smem:[#allocation10 + $0x180]]
    %s158 = sld [smem:[#allocation2]]
    %v159 = vld [vmem:[%s0] sm:$0xff]
    %s160 = sadd.s32 0, 8
    %s161 = scalar_lea.vmem %s0, %s160
    %v162 = vld [vmem:[%s161] sm:$0xff]
    %s163 = sadd.s32 0, 16
    %s164 = scalar_lea.vmem %s0, %s163
    %v165 = vld [vmem:[%s164] sm:$0xff]
    %v166 = vstv %s86
    %v167 = vmul.f32 %v159, %v166
    %v168 = vstv %s94
    %v169 = vmul.f32 %v162, %v168
    %v170 = vadd.f32 %v167, %v169
    %v171 = vstv %s102
    %v172 = vmul.f32 %v165, %v171
    %v173 = vadd.f32 %v170, %v172
    %v174 = vstv %s110
    %v175 = vadd.f32 %v173, %v174
    %v176 = vmul.f32 %v175, 0.01
    %v177 = vmax.f32 %v175, %v176
    %v178 = vstv %s87
    %v179 = vmul.f32 %v159, %v178
    %v180 = vstv %s95
    %v181 = vmul.f32 %v162, %v180
    %v182 = vadd.f32 %v179, %v181
    %v183 = vstv %s103
    %v184 = vmul.f32 %v165, %v183
    %v185 = vadd.f32 %v182, %v184
    %v186 = vstv %s111
    %v187 = vadd.f32 %v185, %v186
    %v188 = vmul.f32 %v187, 0.01
    %v189 = vmax.f32 %v187, %v188
    %v190 = vstv %s88
    %v191 = vmul.f32 %v159, %v190
    %v192 = vstv %s96
    %v193 = vmul.f32 %v162, %v192
    %v194 = vadd.f32 %v191, %v193
    %v195 = vstv %s104
    %v196 = vmul.f32 %v165, %v195
    %v197 = vadd.f32 %v194, %v196
    %v198 = vstv %s112
    %v199 = vadd.f32 %v197, %v198
    %v200 = vmul.f32 %v199, 0.01
    %v201 = vmax.f32 %v199, %v200
    %v202 = vstv %s89
    %v203 = vmul.f32 %v159, %v202
    %v204 = vstv %s97
    %v205 = vmul.f32 %v162, %v204
    %v206 = vadd.f32 %v203, %v205
    %v207 = vstv %s105
    %v208 = vmul.f32 %v165, %v207
    %v209 = vadd.f32 %v206, %v208
    %v210 = vstv %s113
    %v211 = vadd.f32 %v209, %v210
    %v212 = vmul.f32 %v211, 0.01
    %v213 = vmax.f32 %v211, %v212
    %v214 = vstv %s90
    %v215 = vmul.f32 %v159, %v214
    %v216 = vstv %s98
    %v217 = vmul.f32 %v162, %v216
    %v218 = vadd.f32 %v215, %v217
    %v219 = vstv %s106
    %v220 = vmul.f32 %v165, %v219
    %v221 = vadd.f32 %v218, %v220
    %v222 = vstv %s114
    %v223 = vadd.f32 %v221, %v222
    %v224 = vmul.f32 %v223, 0.01
    %v225 = vmax.f32 %v223, %v224
    %v226 = vstv %s91
    %v227 = vmul.f32 %v159, %v226
    %v228 = vstv %s99
    %v229 = vmul.f32 %v162, %v228
    %v230 = vadd.f32 %v227, %v229
    %v231 = vstv %s107
    %v232 = vmul.f32 %v165, %v231
    %v233 = vadd.f32 %v230, %v232
    %v234 = vstv %s115
    %v235 = vadd.f32 %v233, %v234
    %v236 = vmul.f32 %v235, 0.01
    %v237 = vmax.f32 %v235, %v236
    %v238 = vstv %s92
    %v239 = vmul.f32 %v159, %v238
    %v240 = vstv %s100
    %v241 = vmul.f32 %v162, %v240
    %v242 = vadd.f32 %v239, %v241
    %v243 = vstv %s108
    %v244 = vmul.f32 %v165, %v243
    %v245 = vadd.f32 %v242, %v244
    %v246 = vstv %s116
    %v247 = vadd.f32 %v245, %v246
    %v248 = vmul.f32 %v247, 0.01
    %v249 = vmax.f32 %v247, %v248
    %v250 = vstv %s93
    %v251 = vmul.f32 %v159, %v250
    %v252 = vstv %s101
    %v253 = vmul.f32 %v162, %v252
    %v254 = vadd.f32 %v251, %v253
    %v255 = vstv %s109
    %v256 = vmul.f32 %v165, %v255
    %v257 = vadd.f32 %v254, %v256
    %v258 = vstv %s117
    %v259 = vadd.f32 %v257, %v258
    %v260 = vmul.f32 %v259, 0.01
    %v261 = vmax.f32 %v259, %v260
    %v262 = vstv %s118
    %v263 = vmul.f32 %v177, %v262
    %v264 = vstv %s122
    %v265 = vmul.f32 %v189, %v264
    %v266 = vadd.f32 %v263, %v265
    %v267 = vstv %s126
    %v268 = vmul.f32 %v201, %v267
    %v269 = vadd.f32 %v266, %v268
    %v270 = vstv %s130
    %v271 = vmul.f32 %v213, %v270
    %v272 = vadd.f32 %v269, %v271
    %v273 = vstv %s134
    %v274 = vmul.f32 %v225, %v273
    %v275 = vadd.f32 %v272, %v274
    %v276 = vstv %s138
    %v277 = vmul.f32 %v237, %v276
    %v278 = vadd.f32 %v275, %v277
    %v279 = vstv %s142
    %v280 = vmul.f32 %v249, %v279
    %v281 = vadd.f32 %v278, %v280
    %v282 = vstv %s146
    %v283 = vmul.f32 %v261, %v282
    %v284 = vadd.f32 %v281, %v283
    %v285 = vstv %s150
    %v286 = vadd.f32 %v284, %v285
    %v287 = vmul.f32 %v286, 0.01
    %v288 = vmax.f32 %v286, %v287
    %v289 = vstv %s119
    %v290 = vmul.f32 %v177, %v289
    %v291 = vstv %s123
    %v292 = vmul.f32 %v189, %v291
    %v293 = vadd.f32 %v290, %v292
    %v294 = vstv %s127
    %v295 = vmul.f32 %v201, %v294
    %v296 = vadd.f32 %v293, %v295
    %v297 = vstv %s131
    %v298 = vmul.f32 %v213, %v297
    %v299 = vadd.f32 %v296, %v298
    %v300 = vstv %s135
    %v301 = vmul.f32 %v225, %v300
    %v302 = vadd.f32 %v299, %v301
    %v303 = vstv %s139
    %v304 = vmul.f32 %v237, %v303
    %v305 = vadd.f32 %v302, %v304
    %v306 = vstv %s143
    %v307 = vmul.f32 %v249, %v306
    %v308 = vadd.f32 %v305, %v307
    %v309 = vstv %s147
    %v310 = vmul.f32 %v261, %v309
    %v311 = vadd.f32 %v308, %v310
    %v312 = vstv %s151
    %v313 = vadd.f32 %v311, %v312
    %v314 = vmul.f32 %v313, 0.01
    %v315 = vmax.f32 %v313, %v314
    %v316 = vstv %s120
    %v317 = vmul.f32 %v177, %v316
    %v318 = vstv %s124
    %v319 = vmul.f32 %v189, %v318
    %v320 = vadd.f32 %v317, %v319
    %v321 = vstv %s128
    %v322 = vmul.f32 %v201, %v321
    %v323 = vadd.f32 %v320, %v322
    %v324 = vstv %s132
    %v325 = vmul.f32 %v213, %v324
    %v326 = vadd.f32 %v323, %v325
    %v327 = vstv %s136
    %v328 = vmul.f32 %v225, %v327
    %v329 = vadd.f32 %v326, %v328
    %v330 = vstv %s140
    %v331 = vmul.f32 %v237, %v330
    %v332 = vadd.f32 %v329, %v331
    %v333 = vstv %s144
    %v334 = vmul.f32 %v249, %v333
    %v335 = vadd.f32 %v332, %v334
    %v336 = vstv %s148
    %v337 = vmul.f32 %v261, %v336
    %v338 = vadd.f32 %v335, %v337
    %v339 = vstv %s152
    %v340 = vadd.f32 %v338, %v339
    %v341 = vmul.f32 %v340, 0.01
    %v342 = vmax.f32 %v340, %v341
    %v343 = vstv %s121
    %v344 = vmul.f32 %v177, %v343
    %v345 = vstv %s125
    %v346 = vmul.f32 %v189, %v345
    %v347 = vadd.f32 %v344, %v346
    %v348 = vstv %s129
    %v349 = vmul.f32 %v201, %v348
    %v350 = vadd.f32 %v347, %v349
    %v351 = vstv %s133
    %v352 = vmul.f32 %v213, %v351
    %v353 = vadd.f32 %v350, %v352
    %v354 = vstv %s137
    %v355 = vmul.f32 %v225, %v354
    %v356 = vadd.f32 %v353, %v355
    %v357 = vstv %s141
    %v358 = vmul.f32 %v237, %v357
    %v359 = vadd.f32 %v356, %v358
    %v360 = vstv %s145
    %v361 = vmul.f32 %v249, %v360
    %v362 = vadd.f32 %v359, %v361
    %v363 = vstv %s149
    %v364 = vmul.f32 %v261, %v363
    %v365 = vadd.f32 %v362, %v364
    %v366 = vstv %s153
    %v367 = vadd.f32 %v365, %v366
    %v368 = vmul.f32 %v367, 0.01
    %v369 = vmax.f32 %v367, %v368
    %v370 = vstv %s154
    %v371 = vmul.f32 %v288, %v370
    %v372 = vstv %s155
    %v373 = vmul.f32 %v315, %v372
    %v374 = vadd.f32 %v371, %v373
    %v375 = vstv %s156
    %v376 = vmul.f32 %v342, %v375
    %v377 = vadd.f32 %v374, %v376
    %v378 = vstv %s157
    %v379 = vmul.f32 %v369, %v378
    %v380 = vadd.f32 %v377, %v379
    %v381 = vstv %s158
    %v382 = vadd.f32 %v380, %v381
    %383 = vst [vmem:[%s7] sm:$0xff] %v382
    // Predicated region
    $region50: #{simple_neuron_forward.1} parent=1 // pred_check
      _
    $region51: #{simple_neuron_forward.1} parent=1 // pred_check_branch
      %385 = sbr.rel (0) target = $region53
    $region52: #{simple_neuron_forward.1} parent=1 // pred_region
      _
    $region53: #{simple_neuron_forward.1} parent=1 // pred_fallthru
      _
    // Predicated region
    $region54: #{simple_neuron_forward.1} parent=1 // pred_check
      _
    $region55: #{simple_neuron_forward.1} parent=1 // pred_check_branch
      %387 = sbr.rel (0) target = $region57
    $region56: #{simple_neuron_forward.1} parent=1 // pred_region
      _
    $region57: #{simple_neuron_forward.1} parent=1 // pred_fallthru
      _
    %388 = vsyncpa [#allocation4], 1
    %389 = vsyncpa [#allocation6], 1
    %390 = vsyncpa [#allocation9], 1

</llo_original>
